<compile_context>
chip_gen: v7x
topology: tpu7x:2x2x1
jax: 0.10.0
libtpu: 0.0.40
codegen_flags: <defaults>
</compile_context>

<pallas_src>
import jax
import jax.numpy as jnp
from jax import lax
from jax.experimental import pallas as pl
from jax.experimental.pallas import tpu as pltpu


def _make_down_kernel(H, W):
    Hp, Wp = H // 2, W // 2
    S = Hp * Wp

    def kernel(x_ref, g_ref, dw1_ref, pw1_ref, dw2_ref, pwsc_ref, a_ref, o_ref):
        # x_ref:    (1, Cin, H*W)      flattened NCHW input (spatial on lanes)
        # g_ref:    (H*W, Hp*Wp)       one-hot max-pool compaction matrix
        # dw*_ref:  (C, 9)             depthwise 3x3 weights, tap k=(dh+1)*3+(dw+1)
        # pw1_ref:  (Cout, Cin)        pointwise1 1x1
        # pwsc_ref: (Cout, Cout+Cin)   fused [pointwise2 | shortcut] 1x1
        # a_ref:    (1,) in SMEM       PReLU slope (shared, nn.PReLU() default)
        # o_ref:    (1, Cout, Hp*Wp)   lane-dense output
        x = x_ref[0]                                                  # (Cin, H*W)

        # --- MaxPool2d(2): window max via lane rolls, compaction via matmul ---
        m = jnp.maximum(jnp.maximum(x, jnp.roll(x, -1, axis=-1)),
                        jnp.maximum(jnp.roll(x, -W, axis=-1),
                                    jnp.roll(x, -(W + 1), axis=-1)))
        pooled = jnp.dot(m, g_ref[...],
                         preferred_element_type=jnp.float32)          # (Cin, S)

        # column index within each pooled row (for circular W-wrap fix-up)
        col = lax.broadcasted_iota(jnp.int32, (1, S), 1) % Wp

        def shift_w(t, dw):
            # circular shift by `dw` along pooled-W, on the flat (C, S) layout
            if dw == 0:
                return t
            if dw == 1:
                return jnp.where(col == Wp - 1,
                                 jnp.roll(t, Wp - 1, axis=-1),
                                 jnp.roll(t, -1, axis=-1))
            return jnp.where(col == 0,
                             jnp.roll(t, -(Wp - 1), axis=-1),
                             jnp.roll(t, 1, axis=-1))

        def dwconv3x3_circ(t, w_ref):
            # depthwise 3x3 conv, circular padding.  All rolls are single-axis
            # lane rotates on a 2-D array (XLU work); weight load is hoisted.
            w = w_ref[...]                                            # (C, 9)
            acc = jnp.zeros_like(t)
            for dw_ in (-1, 0, 1):
                tw = shift_w(t, dw_)
                for dh in (-1, 0, 1):
                    k = (dh + 1) * 3 + (dw_ + 1)
                    tap = jnp.roll(tw, -dh * Wp, axis=-1) if dh else tw
                    acc = acc + tap * w[:, k:k + 1]                   # lane bcast FMA
            return acc

        a = a_ref[0]

        # --- double_conv_dw ---
        r1 = dwconv3x3_circ(pooled, dw1_ref) + pooled                 # (Cin, S)
        r1 = jnp.dot(pw1_ref[...], r1,
                     preferred_element_type=jnp.float32)              # (Cout, S)
        r1 = jnp.where(r1 >= 0, r1, a * r1)                           # PReLU
        r2 = dwconv3x3_circ(r1, dw2_ref) + r1                         # (Cout, S)

        # fused pointwise2 + shortcut: [pw2 | sc] @ [r2 ; pooled]
        cat = jnp.concatenate([r2, pooled], axis=0)                   # (Cout+Cin, S)
        out = jnp.dot(pwsc_ref[...], cat,
                      preferred_element_type=jnp.float32)             # (Cout, S)
        o_ref[0] = out.astype(o_ref.dtype)

    return kernel


def down_pallas(x_nchw, dw1, pw1, dw2, pw2, scw, prelu_a):
    """x_nchw: (N, Cin, H, W) f32.  Weights in PyTorch layout:
       dw1: (Cin,1,3,3)  pw1: (Cout,Cin,1,1)  dw2: (Cout,1,3,3)
       pw2: (Cout,Cout,1,1)  scw: (Cout,Cin,1,1)  prelu_a: scalar
       Returns (N, Cout, H//2, W//2) in NCHW."""
    N, Cin, H, W = x_nchw.shape
    assert H % 2 == 0 and W % 2 == 0
    Hp, Wp = H // 2, W // 2
    S = Hp * Wp
    Cout = pw1.shape[0]

    # Only free (contiguous) reshapes on the activation side -- no transposes.
    x_flat = x_nchw.reshape(N, Cin, H * W)
    dw1_k = dw1.reshape(Cin, 9)
    dw2_k = dw2.reshape(Cout, 9)
    pw1_k = pw1.reshape(Cout, Cin)
    pwsc_k = jnp.concatenate([pw2.reshape(Cout, Cout),
                              scw.reshape(Cout, Cin)], axis=1)        # (Cout, Cout+Cin)
    a_k = jnp.full((1,), prelu_a, jnp.float32)

    # One-hot compaction matrix: flat index 2i*W+2j -> pooled index i*Wp+j.
    rows = (2 * jnp.arange(Hp)[:, None] * W
            + 2 * jnp.arange(Wp)[None, :]).reshape(-1)
    G = jnp.zeros((H * W, S), jnp.float32).at[rows, jnp.arange(S)].set(1.0)
    # TODO(synk): for production spatial sizes, replace G with a row-tiled
    # two-stage compaction + a grid axis over Hp (circular halo) and set
    # vmem_limit_bytes explicitly for v7x's 64 MiB VMEM.

    kernel = _make_down_kernel(H, W)

    out_flat = pl.pallas_call(
        kernel,
        out_shape=jax.ShapeDtypeStruct((N, Cout, S), jnp.float32),
        grid_spec=pltpu.PrefetchScalarGridSpec(
            num_scalar_prefetch=0,
            grid=(N,),
            in_specs=[
                pl.BlockSpec((1, Cin, H * W), lambda n: (n, 0, 0)),
                pl.BlockSpec((H * W, S), lambda n: (0, 0)),
                pl.BlockSpec((Cin, 9), lambda n: (0, 0)),
                pl.BlockSpec((Cout, Cin), lambda n: (0, 0)),
                pl.BlockSpec((Cout, 9), lambda n: (0, 0)),
                pl.BlockSpec((Cout, Cout + Cin), lambda n: (0, 0)),
                pl.BlockSpec(memory_space=pltpu.MemorySpace.SMEM),
            ],
            out_specs=pl.BlockSpec((1, Cout, S), lambda n: (n, 0, 0)),
        ),
        compiler_params=pltpu.CompilerParams(
            dimension_semantics=("parallel",)),
    )(x_flat, G, dw1_k, pw1_k, dw2_k, pwsc_k, a_k)

    return out_flat.reshape(N, Cout, Hp, Wp)    # free reshape back to NCHW


def down_reference(x_nchw, dw1, pw1, dw2, pw2, scw, prelu_a):
    """Plain-JAX reference matching PyTorch `down` forward semantics."""
    N, C, H, W = x_nchw.shape
    xp = x_nchw.reshape(N, C, H // 2, 2, W // 2, 2).max(axis=(3, 5))

    def dw_circ(x, w):
        xpad = jnp.pad(x, ((0, 0), (0, 0), (1, 1), (1, 1)), mode="wrap")
        return lax.conv_general_dilated(xpad, w, (1, 1), "VALID",
                                        feature_group_count=x.shape[1])

    def pw(x, w):
        return lax.conv_general_dilated(x, w, (1, 1), "VALID")

    res1 = dw_circ(xp, dw1) + xp
    res1 = pw(res1, pw1)
    res1 = jnp.where(res1 >= 0, res1, prelu_a * res1)
    res2 = dw_circ(res1, dw2) + res1
    res2 = pw(res2, pw2)
    res2 = res2 + pw(xp, scw)
    return res2


if __name__ == "__main__":
    # small shapes consistent with the module: NCHW input, in_ch=4, out_ch=8
    N, Cin, H, W = 2, 4, 16, 16
    Cout = 8

    key = jax.random.PRNGKey(0)
    k_x, k1, k2, k3, k4, k5 = jax.random.split(key, 6)

    x = jax.random.normal(k_x, (N, Cin, H, W), jnp.float32)
    dw1 = jax.random.normal(k1, (Cin, 1, 3, 3), jnp.float32) * 0.2    # depthwise1
    pw1 = jax.random.normal(k2, (Cout, Cin, 1, 1), jnp.float32) * 0.2  # pointwise1
    dw2 = jax.random.normal(k3, (Cout, 1, 3, 3), jnp.float32) * 0.2   # depthwise2
    pw2 = jax.random.normal(k4, (Cout, Cout, 1, 1), jnp.float32) * 0.2  # pointwise2
    scw = jax.random.normal(k5, (Cout, Cin, 1, 1), jnp.float32) * 0.2  # shortcut
    prelu_a = 0.25  # nn.PReLU() default init (single shared slope)

    out = down_pallas(x, dw1, pw1, dw2, pw2, scw, prelu_a)
    out = jax.block_until_ready(out)

    ref = down_reference(x, dw1, pw1, dw2, pw2, scw, prelu_a)
    assert out.shape == (N, Cout, H // 2, W // 2), out.shape
    err = float(jnp.max(jnp.abs(out - ref)))
    assert jnp.allclose(out, ref, atol=1e-3, rtol=1e-3), err

    print("KERNEL_OK")
</pallas_src>

<mosaic_0001>
module attributes {stable_mosaic.version = 11 : i64} {
  func.func @kernel(%arg0: i32, %arg1: memref<1x4x256xf32, #tpu.memory_space<vmem>>, %arg2: memref<256x64xf32, #tpu.memory_space<vmem>>, %arg3: memref<4x9xf32, #tpu.memory_space<vmem>>, %arg4: memref<8x4xf32, #tpu.memory_space<vmem>>, %arg5: memref<8x9xf32, #tpu.memory_space<vmem>>, %arg6: memref<8x12xf32, #tpu.memory_space<vmem>>, %arg7: memref<1xf32, #tpu.memory_space<smem>>, %arg8: memref<1x8x64xf32, #tpu.memory_space<vmem>>) attributes {dimension_semantics = [#tpu.dimension_semantics<parallel>], iteration_bounds = array<i64: 2>, scalar_prefetch = 0 : i64, scratch_operands = 0 : i64, tpu.core_type = #tpu.core_type<tc>, window_params = [{transform_indices = @transform_0, window_bounds = array<i64: 1, 4, 256>}, {pipeline_mode = #tpu.pipeline_mode<synchronous>, transform_indices = @transform_1, window_bounds = array<i64: 256, 64>}, {pipeline_mode = #tpu.pipeline_mode<synchronous>, transform_indices = @transform_2, window_bounds = array<i64: 4, 9>}, {pipeline_mode = #tpu.pipeline_mode<synchronous>, transform_indices = @transform_3, window_bounds = array<i64: 8, 4>}, {pipeline_mode = #tpu.pipeline_mode<synchronous>, transform_indices = @transform_4, window_bounds = array<i64: 8, 9>}, {pipeline_mode = #tpu.pipeline_mode<synchronous>, transform_indices = @transform_5, window_bounds = array<i64: 8, 12>}, {transform_indices = @transform_6, window_bounds = array<i64: 1>}, {transform_indices = @transform_7, window_bounds = array<i64: 1, 8, 64>}]} {
    %c0 = arith.constant 0 : index
    %c0_0 = arith.constant 0 : index
    %c0_1 = arith.constant 0 : index
    %0 = vector.load %arg1[%c0, %c0_0, %c0_1] : memref<1x4x256xf32, #tpu.memory_space<vmem>>, vector<1x4x256xf32>
    %1 = vector.shape_cast %0 : vector<1x4x256xf32> to vector<4x256xf32>
    %2 = vector.extract_strided_slice %1 {offsets = [0, 1], sizes = [4, 255], strides = [1, 1]} : vector<4x256xf32> to vector<4x255xf32>
    %3 = vector.extract_strided_slice %1 {offsets = [0, 0], sizes = [4, 1], strides = [1, 1]} : vector<4x256xf32> to vector<4x1xf32>
    %4 = tpu.concatenate %2, %3 in 1 : vector<4x255xf32>, vector<4x1xf32> -> vector<4x256xf32>
    %5 = arith.maximumf %1, %4 : vector<4x256xf32>
    %6 = vector.extract_strided_slice %1 {offsets = [0, 16], sizes = [4, 240], strides = [1, 1]} : vector<4x256xf32> to vector<4x240xf32>
    %7 = vector.extract_strided_slice %1 {offsets = [0, 0], sizes = [4, 16], strides = [1, 1]} : vector<4x256xf32> to vector<4x16xf32>
    %8 = tpu.concatenate %6, %7 in 1 : vector<4x240xf32>, vector<4x16xf32> -> vector<4x256xf32>
    %9 = vector.extract_strided_slice %1 {offsets = [0, 17], sizes = [4, 239], strides = [1, 1]} : vector<4x256xf32> to vector<4x239xf32>
    %10 = vector.extract_strided_slice %1 {offsets = [0, 0], sizes = [4, 17], strides = [1, 1]} : vector<4x256xf32> to vector<4x17xf32>
    %11 = tpu.concatenate %9, %10 in 1 : vector<4x239xf32>, vector<4x17xf32> -> vector<4x256xf32>
    %12 = arith.maximumf %8, %11 : vector<4x256xf32>
    %13 = arith.maximumf %5, %12 : vector<4x256xf32>
    %c0_2 = arith.constant 0 : index
    %c0_3 = arith.constant 0 : index
    %14 = vector.load %arg2[%c0_2, %c0_3] : memref<256x64xf32, #tpu.memory_space<vmem>>, vector<256x64xf32>
    %cst = arith.constant dense<0.000000e+00> : vector<4x64xf32>
    %15 = tpu.matmul %13, %14, %cst {dimension_numbers = #tpu.dot_dimension_numbers<[1], [0], [0], [1], [0, 0, 1, 1], [], []>} : vector<4x256xf32>, vector<256x64xf32>, vector<4x64xf32> -> vector<4x64xf32>
    %16 = tpu.iota {dimensions = array<i32: 1>} : vector<1x64xi32>
    %c8_i32 = arith.constant 8 : i32
    %c0_i32 = arith.constant 0 : i32
    %17 = arith.cmpi eq, %c8_i32, %c0_i32 : i32
    %c1_i32 = arith.constant 1 : i32
    %18 = arith.select %17, %c1_i32, %c8_i32 : i32
    %19 = vector.broadcast %18 : i32 to vector<1x64xi32>
    %20 = arith.remsi %16, %19 : vector<1x64xi32>
    %c0_i32_4 = arith.constant 0 : i32
    %21 = vector.broadcast %c0_i32_4 : i32 to vector<1x64xi32>
    %22 = arith.cmpi ne, %20, %21 : vector<1x64xi32>
    %c0_i32_5 = arith.constant 0 : i32
    %23 = vector.broadcast %c0_i32_5 : i32 to vector<1x64xi32>
    %24 = arith.cmpi slt, %20, %23 : vector<1x64xi32>
    %c0_i32_6 = arith.constant 0 : i32
    %25 = arith.cmpi slt, %18, %c0_i32_6 : i32
    %26 = vector.broadcast %25 : i1 to vector<1x64xi1>
    %27 = vector.broadcast %26 : vector<1x64xi1> to vector<1x64xi1>
    %28 = arith.xori %24, %27 : vector<1x64xi1>
    %29 = arith.andi %28, %22 : vector<1x64xi1>
    %30 = vector.broadcast %18 : i32 to vector<1x64xi32>
    %31 = arith.addi %20, %30 : vector<1x64xi32>
    %32 = arith.select %29, %31, %20 : vector<1x64xi1>, vector<1x64xi32>
    %c0_7 = arith.constant 0 : index
    %33 = memref.load %arg7[%c0_7] : memref<1xf32, #tpu.memory_space<smem>>
    %c0_8 = arith.constant 0 : index
    %c0_9 = arith.constant 0 : index
    %34 = vector.load %arg3[%c0_8, %c0_9] : memref<4x9xf32, #tpu.memory_space<vmem>>, vector<4x9xf32>
    %cst_10 = arith.constant 0.000000e+00 : f32
    %35 = vector.broadcast %cst_10 : f32 to vector<4x64xf32>
    %c0_i32_11 = arith.constant 0 : i32
    %36 = vector.broadcast %c0_i32_11 : i32 to vector<1x64xi32>
    %37 = arith.cmpi eq, %32, %36 : vector<1x64xi32>
    %38 = vector.extract_strided_slice %15 {offsets = [0, 7], sizes = [4, 57], strides = [1, 1]} : vector<4x64xf32> to vector<4x57xf32>
    %39 = vector.extract_strided_slice %15 {offsets = [0, 0], sizes = [4, 7], strides = [1, 1]} : vector<4x64xf32> to vector<4x7xf32>
    %40 = tpu.concatenate %38, %39 in 1 : vector<4x57xf32>, vector<4x7xf32> -> vector<4x64xf32>
    %41 = vector.extract_strided_slice %15 {offsets = [0, 63], sizes = [4, 1], strides = [1, 1]} : vector<4x64xf32> to vector<4x1xf32>
    %42 = vector.extract_strided_slice %15 {offsets = [0, 0], sizes = [4, 63], strides = [1, 1]} : vector<4x64xf32> to vector<4x63xf32>
    %43 = tpu.concatenate %41, %42 in 1 : vector<4x1xf32>, vector<4x63xf32> -> vector<4x64xf32>
    %44 = vector.shape_cast %37 : vector<1x64xi1> to vector<1x64xi1>
    %45 = vector.broadcast %44 : vector<1x64xi1> to vector<4x64xi1>
    %46 = arith.select %45, %40, %43 : vector<4x64xi1>, vector<4x64xf32>
    %47 = vector.extract_strided_slice %46 {offsets = [0, 56], sizes = [4, 8], strides = [1, 1]} : vector<4x64xf32> to vector<4x8xf32>
    %48 = vector.extract_strided_slice %46 {offsets = [0, 0], sizes = [4, 56], strides = [1, 1]} : vector<4x64xf32> to vector<4x56xf32>
    %49 = tpu.concatenate %47, %48 in 1 : vector<4x8xf32>, vector<4x56xf32> -> vector<4x64xf32>
    %50 = vector.extract_strided_slice %34 {offsets = [0, 0], sizes = [4, 1], strides = [1, 1]} : vector<4x9xf32> to vector<4x1xf32>
    %51 = vector.broadcast %50 : vector<4x1xf32> to vector<4x64xf32>
    %52 = arith.mulf %49, %51 : vector<4x64xf32>
    %53 = arith.addf %35, %52 : vector<4x64xf32>
    %54 = vector.extract_strided_slice %34 {offsets = [0, 3], sizes = [4, 1], strides = [1, 1]} : vector<4x9xf32> to vector<4x1xf32>
    %55 = vector.broadcast %54 : vector<4x1xf32> to vector<4x64xf32>
    %56 = arith.mulf %46, %55 : vector<4x64xf32>
    %57 = arith.addf %53, %56 : vector<4x64xf32>
    %58 = vector.extract_strided_slice %46 {offsets = [0, 8], sizes = [4, 56], strides = [1, 1]} : vector<4x64xf32> to vector<4x56xf32>
    %59 = vector.extract_strided_slice %46 {offsets = [0, 0], sizes = [4, 8], strides = [1, 1]} : vector<4x64xf32> to vector<4x8xf32>
    %60 = tpu.concatenate %58, %59 in 1 : vector<4x56xf32>, vector<4x8xf32> -> vector<4x64xf32>
    %61 = vector.extract_strided_slice %34 {offsets = [0, 6], sizes = [4, 1], strides = [1, 1]} : vector<4x9xf32> to vector<4x1xf32>
    %62 = vector.broadcast %61 : vector<4x1xf32> to vector<4x64xf32>
    %63 = arith.mulf %60, %62 : vector<4x64xf32>
    %64 = arith.addf %57, %63 : vector<4x64xf32>
    %65 = vector.extract_strided_slice %15 {offsets = [0, 56], sizes = [4, 8], strides = [1, 1]} : vector<4x64xf32> to vector<4x8xf32>
    %66 = vector.extract_strided_slice %15 {offsets = [0, 0], sizes = [4, 56], strides = [1, 1]} : vector<4x64xf32> to vector<4x56xf32>
    %67 = tpu.concatenate %65, %66 in 1 : vector<4x8xf32>, vector<4x56xf32> -> vector<4x64xf32>
    %68 = vector.extract_strided_slice %34 {offsets = [0, 1], sizes = [4, 1], strides = [1, 1]} : vector<4x9xf32> to vector<4x1xf32>
    %69 = vector.broadcast %68 : vector<4x1xf32> to vector<4x64xf32>
    %70 = arith.mulf %67, %69 : vector<4x64xf32>
    %71 = arith.addf %64, %70 : vector<4x64xf32>
    %72 = vector.extract_strided_slice %34 {offsets = [0, 4], sizes = [4, 1], strides = [1, 1]} : vector<4x9xf32> to vector<4x1xf32>
    %73 = vector.broadcast %72 : vector<4x1xf32> to vector<4x64xf32>
    %74 = arith.mulf %15, %73 : vector<4x64xf32>
    %75 = arith.addf %71, %74 : vector<4x64xf32>
    %76 = vector.extract_strided_slice %15 {offsets = [0, 8], sizes = [4, 56], strides = [1, 1]} : vector<4x64xf32> to vector<4x56xf32>
    %77 = vector.extract_strided_slice %15 {offsets = [0, 0], sizes = [4, 8], strides = [1, 1]} : vector<4x64xf32> to vector<4x8xf32>
    %78 = tpu.concatenate %76, %77 in 1 : vector<4x56xf32>, vector<4x8xf32> -> vector<4x64xf32>
    %79 = vector.extract_strided_slice %34 {offsets = [0, 7], sizes = [4, 1], strides = [1, 1]} : vector<4x9xf32> to vector<4x1xf32>
    %80 = vector.broadcast %79 : vector<4x1xf32> to vector<4x64xf32>
    %81 = arith.mulf %78, %80 : vector<4x64xf32>
    %82 = arith.addf %75, %81 : vector<4x64xf32>
    %c7_i32 = arith.constant 7 : i32
    %83 = vector.broadcast %c7_i32 : i32 to vector<1x64xi32>
    %84 = arith.cmpi eq, %32, %83 : vector<1x64xi32>
    %85 = vector.extract_strided_slice %15 {offsets = [0, 57], sizes = [4, 7], strides = [1, 1]} : vector<4x64xf32> to vector<4x7xf32>
    %86 = vector.extract_strided_slice %15 {offsets = [0, 0], sizes = [4, 57], strides = [1, 1]} : vector<4x64xf32> to vector<4x57xf32>
    %87 = tpu.concatenate %85, %86 in 1 : vector<4x7xf32>, vector<4x57xf32> -> vector<4x64xf32>
    %88 = vector.extract_strided_slice %15 {offsets = [0, 1], sizes = [4, 63], strides = [1, 1]} : vector<4x64xf32> to vector<4x63xf32>
    %89 = vector.extract_strided_slice %15 {offsets = [0, 0], sizes = [4, 1], strides = [1, 1]} : vector<4x64xf32> to vector<4x1xf32>
    %90 = tpu.concatenate %88, %89 in 1 : vector<4x63xf32>, vector<4x1xf32> -> vector<4x64xf32>
    %91 = vector.shape_cast %84 : vector<1x64xi1> to vector<1x64xi1>
    %92 = vector.broadcast %91 : vector<1x64xi1> to vector<4x64xi1>
    %93 = arith.select %92, %87, %90 : vector<4x64xi1>, vector<4x64xf32>
    %94 = vector.extract_strided_slice %93 {offsets = [0, 56], sizes = [4, 8], strides = [1, 1]} : vector<4x64xf32> to vector<4x8xf32>
    %95 = vector.extract_strided_slice %93 {offsets = [0, 0], sizes = [4, 56], strides = [1, 1]} : vector<4x64xf32> to vector<4x56xf32>
    %96 = tpu.concatenate %94, %95 in 1 : vector<4x8xf32>, vector<4x56xf32> -> vector<4x64xf32>
    %97 = vector.extract_strided_slice %34 {offsets = [0, 2], sizes = [4, 1], strides = [1, 1]} : vector<4x9xf32> to vector<4x1xf32>
    %98 = vector.broadcast %97 : vector<4x1xf32> to vector<4x64xf32>
    %99 = arith.mulf %96, %98 : vector<4x64xf32>
    %100 = arith.addf %82, %99 : vector<4x64xf32>
    %101 = vector.extract_strided_slice %34 {offsets = [0, 5], sizes = [4, 1], strides = [1, 1]} : vector<4x9xf32> to vector<4x1xf32>
    %102 = vector.broadcast %101 : vector<4x1xf32> to vector<4x64xf32>
    %103 = arith.mulf %93, %102 : vector<4x64xf32>
    %104 = arith.addf %100, %103 : vector<4x64xf32>
    %105 = vector.extract_strided_slice %93 {offsets = [0, 8], sizes = [4, 56], strides = [1, 1]} : vector<4x64xf32> to vector<4x56xf32>
    %106 = vector.extract_strided_slice %93 {offsets = [0, 0], sizes = [4, 8], strides = [1, 1]} : vector<4x64xf32> to vector<4x8xf32>
    %107 = tpu.concatenate %105, %106 in 1 : vector<4x56xf32>, vector<4x8xf32> -> vector<4x64xf32>
    %108 = vector.extract_strided_slice %34 {offsets = [0, 8], sizes = [4, 1], strides = [1, 1]} : vector<4x9xf32> to vector<4x1xf32>
    %109 = vector.broadcast %108 : vector<4x1xf32> to vector<4x64xf32>
    %110 = arith.mulf %107, %109 : vector<4x64xf32>
    %111 = arith.addf %104, %110 : vector<4x64xf32>
    %112 = arith.addf %111, %15 : vector<4x64xf32>
    %c0_12 = arith.constant 0 : index
    %c0_13 = arith.constant 0 : index
    %113 = vector.load %arg4[%c0_12, %c0_13] : memref<8x4xf32, #tpu.memory_space<vmem>>, vector<8x4xf32>
    %cst_14 = arith.constant dense<0.000000e+00> : vector<8x64xf32>
    %114 = tpu.matmul %113, %112, %cst_14 {dimension_numbers = #tpu.dot_dimension_numbers<[1], [0], [0], [1], [0, 0, 1, 1], [], []>} : vector<8x4xf32>, vector<4x64xf32>, vector<8x64xf32> -> vector<8x64xf32>
    %cst_15 = arith.constant 0.000000e+00 : f32
    %115 = vector.broadcast %cst_15 : f32 to vector<8x64xf32>
    %116 = arith.cmpf oge, %114, %115 : vector<8x64xf32>
    %117 = vector.broadcast %33 : f32 to vector<8x64xf32>
    %118 = arith.mulf %117, %114 : vector<8x64xf32>
    %119 = arith.select %116, %114, %118 : vector<8x64xi1>, vector<8x64xf32>
    %c0_16 = arith.constant 0 : index
    %c0_17 = arith.constant 0 : index
    %120 = vector.load %arg5[%c0_16, %c0_17] : memref<8x9xf32, #tpu.memory_space<vmem>>, vector<8x9xf32>
    %cst_18 = arith.constant 0.000000e+00 : f32
    %121 = vector.broadcast %cst_18 : f32 to vector<8x64xf32>
    %c0_i32_19 = arith.constant 0 : i32
    %122 = vector.broadcast %c0_i32_19 : i32 to vector<1x64xi32>
    %123 = arith.cmpi eq, %32, %122 : vector<1x64xi32>
    %124 = vector.extract_strided_slice %119 {offsets = [0, 7], sizes = [8, 57], strides = [1, 1]} : vector<8x64xf32> to vector<8x57xf32>
    %125 = vector.extract_strided_slice %119 {offsets = [0, 0], sizes = [8, 7], strides = [1, 1]} : vector<8x64xf32> to vector<8x7xf32>
    %126 = tpu.concatenate %124, %125 in 1 : vector<8x57xf32>, vector<8x7xf32> -> vector<8x64xf32>
    %127 = vector.extract_strided_slice %119 {offsets = [0, 63], sizes = [8, 1], strides = [1, 1]} : vector<8x64xf32> to vector<8x1xf32>
    %128 = vector.extract_strided_slice %119 {offsets = [0, 0], sizes = [8, 63], strides = [1, 1]} : vector<8x64xf32> to vector<8x63xf32>
    %129 = tpu.concatenate %127, %128 in 1 : vector<8x1xf32>, vector<8x63xf32> -> vector<8x64xf32>
    %130 = vector.shape_cast %123 : vector<1x64xi1> to vector<1x64xi1>
    %131 = vector.broadcast %130 : vector<1x64xi1> to vector<8x64xi1>
    %132 = arith.select %131, %126, %129 : vector<8x64xi1>, vector<8x64xf32>
    %133 = vector.extract_strided_slice %132 {offsets = [0, 56], sizes = [8, 8], strides = [1, 1]} : vector<8x64xf32> to vector<8x8xf32>
    %134 = vector.extract_strided_slice %132 {offsets = [0, 0], sizes = [8, 56], strides = [1, 1]} : vector<8x64xf32> to vector<8x56xf32>
    %135 = tpu.concatenate %133, %134 in 1 : vector<8x8xf32>, vector<8x56xf32> -> vector<8x64xf32>
    %136 = vector.extract_strided_slice %120 {offsets = [0, 0], sizes = [8, 1], strides = [1, 1]} : vector<8x9xf32> to vector<8x1xf32>
    %137 = vector.broadcast %136 : vector<8x1xf32> to vector<8x64xf32>
    %138 = arith.mulf %135, %137 : vector<8x64xf32>
    %139 = arith.addf %121, %138 : vector<8x64xf32>
    %140 = vector.extract_strided_slice %120 {offsets = [0, 3], sizes = [8, 1], strides = [1, 1]} : vector<8x9xf32> to vector<8x1xf32>
    %141 = vector.broadcast %140 : vector<8x1xf32> to vector<8x64xf32>
    %142 = arith.mulf %132, %141 : vector<8x64xf32>
    %143 = arith.addf %139, %142 : vector<8x64xf32>
    %144 = vector.extract_strided_slice %132 {offsets = [0, 8], sizes = [8, 56], strides = [1, 1]} : vector<8x64xf32> to vector<8x56xf32>
    %145 = vector.extract_strided_slice %132 {offsets = [0, 0], sizes = [8, 8], strides = [1, 1]} : vector<8x64xf32> to vector<8x8xf32>
    %146 = tpu.concatenate %144, %145 in 1 : vector<8x56xf32>, vector<8x8xf32> -> vector<8x64xf32>
    %147 = vector.extract_strided_slice %120 {offsets = [0, 6], sizes = [8, 1], strides = [1, 1]} : vector<8x9xf32> to vector<8x1xf32>
    %148 = vector.broadcast %147 : vector<8x1xf32> to vector<8x64xf32>
    %149 = arith.mulf %146, %148 : vector<8x64xf32>
    %150 = arith.addf %143, %149 : vector<8x64xf32>
    %151 = vector.extract_strided_slice %119 {offsets = [0, 56], sizes = [8, 8], strides = [1, 1]} : vector<8x64xf32> to vector<8x8xf32>
    %152 = vector.extract_strided_slice %119 {offsets = [0, 0], sizes = [8, 56], strides = [1, 1]} : vector<8x64xf32> to vector<8x56xf32>
    %153 = tpu.concatenate %151, %152 in 1 : vector<8x8xf32>, vector<8x56xf32> -> vector<8x64xf32>
    %154 = vector.extract_strided_slice %120 {offsets = [0, 1], sizes = [8, 1], strides = [1, 1]} : vector<8x9xf32> to vector<8x1xf32>
    %155 = vector.broadcast %154 : vector<8x1xf32> to vector<8x64xf32>
    %156 = arith.mulf %153, %155 : vector<8x64xf32>
    %157 = arith.addf %150, %156 : vector<8x64xf32>
    %158 = vector.extract_strided_slice %120 {offsets = [0, 4], sizes = [8, 1], strides = [1, 1]} : vector<8x9xf32> to vector<8x1xf32>
    %159 = vector.broadcast %158 : vector<8x1xf32> to vector<8x64xf32>
    %160 = arith.mulf %119, %159 : vector<8x64xf32>
    %161 = arith.addf %157, %160 : vector<8x64xf32>
    %162 = vector.extract_strided_slice %119 {offsets = [0, 8], sizes = [8, 56], strides = [1, 1]} : vector<8x64xf32> to vector<8x56xf32>
    %163 = vector.extract_strided_slice %119 {offsets = [0, 0], sizes = [8, 8], strides = [1, 1]} : vector<8x64xf32> to vector<8x8xf32>
    %164 = tpu.concatenate %162, %163 in 1 : vector<8x56xf32>, vector<8x8xf32> -> vector<8x64xf32>
    %165 = vector.extract_strided_slice %120 {offsets = [0, 7], sizes = [8, 1], strides = [1, 1]} : vector<8x9xf32> to vector<8x1xf32>
    %166 = vector.broadcast %165 : vector<8x1xf32> to vector<8x64xf32>
    %167 = arith.mulf %164, %166 : vector<8x64xf32>
    %168 = arith.addf %161, %167 : vector<8x64xf32>
    %c7_i32_20 = arith.constant 7 : i32
    %169 = vector.broadcast %c7_i32_20 : i32 to vector<1x64xi32>
    %170 = arith.cmpi eq, %32, %169 : vector<1x64xi32>
    %171 = vector.extract_strided_slice %119 {offsets = [0, 57], sizes = [8, 7], strides = [1, 1]} : vector<8x64xf32> to vector<8x7xf32>
    %172 = vector.extract_strided_slice %119 {offsets = [0, 0], sizes = [8, 57], strides = [1, 1]} : vector<8x64xf32> to vector<8x57xf32>
    %173 = tpu.concatenate %171, %172 in 1 : vector<8x7xf32>, vector<8x57xf32> -> vector<8x64xf32>
    %174 = vector.extract_strided_slice %119 {offsets = [0, 1], sizes = [8, 63], strides = [1, 1]} : vector<8x64xf32> to vector<8x63xf32>
    %175 = vector.extract_strided_slice %119 {offsets = [0, 0], sizes = [8, 1], strides = [1, 1]} : vector<8x64xf32> to vector<8x1xf32>
    %176 = tpu.concatenate %174, %175 in 1 : vector<8x63xf32>, vector<8x1xf32> -> vector<8x64xf32>
    %177 = vector.shape_cast %170 : vector<1x64xi1> to vector<1x64xi1>
    %178 = vector.broadcast %177 : vector<1x64xi1> to vector<8x64xi1>
    %179 = arith.select %178, %173, %176 : vector<8x64xi1>, vector<8x64xf32>
    %180 = vector.extract_strided_slice %179 {offsets = [0, 56], sizes = [8, 8], strides = [1, 1]} : vector<8x64xf32> to vector<8x8xf32>
    %181 = vector.extract_strided_slice %179 {offsets = [0, 0], sizes = [8, 56], strides = [1, 1]} : vector<8x64xf32> to vector<8x56xf32>
    %182 = tpu.concatenate %180, %181 in 1 : vector<8x8xf32>, vector<8x56xf32> -> vector<8x64xf32>
    %183 = vector.extract_strided_slice %120 {offsets = [0, 2], sizes = [8, 1], strides = [1, 1]} : vector<8x9xf32> to vector<8x1xf32>
    %184 = vector.broadcast %183 : vector<8x1xf32> to vector<8x64xf32>
    %185 = arith.mulf %182, %184 : vector<8x64xf32>
    %186 = arith.addf %168, %185 : vector<8x64xf32>
    %187 = vector.extract_strided_slice %120 {offsets = [0, 5], sizes = [8, 1], strides = [1, 1]} : vector<8x9xf32> to vector<8x1xf32>
    %188 = vector.broadcast %187 : vector<8x1xf32> to vector<8x64xf32>
    %189 = arith.mulf %179, %188 : vector<8x64xf32>
    %190 = arith.addf %186, %189 : vector<8x64xf32>
    %191 = vector.extract_strided_slice %179 {offsets = [0, 8], sizes = [8, 56], strides = [1, 1]} : vector<8x64xf32> to vector<8x56xf32>
    %192 = vector.extract_strided_slice %179 {offsets = [0, 0], sizes = [8, 8], strides = [1, 1]} : vector<8x64xf32> to vector<8x8xf32>
    %193 = tpu.concatenate %191, %192 in 1 : vector<8x56xf32>, vector<8x8xf32> -> vector<8x64xf32>
    %194 = vector.extract_strided_slice %120 {offsets = [0, 8], sizes = [8, 1], strides = [1, 1]} : vector<8x9xf32> to vector<8x1xf32>
    %195 = vector.broadcast %194 : vector<8x1xf32> to vector<8x64xf32>
    %196 = arith.mulf %193, %195 : vector<8x64xf32>
    %197 = arith.addf %190, %196 : vector<8x64xf32>
    %198 = arith.addf %197, %119 : vector<8x64xf32>
    %199 = tpu.concatenate %198, %15 in 0 : vector<8x64xf32>, vector<4x64xf32> -> vector<12x64xf32>
    %c0_21 = arith.constant 0 : index
    %c0_22 = arith.constant 0 : index
    %200 = vector.load %arg6[%c0_21, %c0_22] : memref<8x12xf32, #tpu.memory_space<vmem>>, vector<8x12xf32>
    %cst_23 = arith.constant dense<0.000000e+00> : vector<8x64xf32>
    %201 = tpu.matmul %200, %199, %cst_23 {dimension_numbers = #tpu.dot_dimension_numbers<[1], [0], [0], [1], [0, 0, 1, 1], [], []>} : vector<8x12xf32>, vector<12x64xf32>, vector<8x64xf32> -> vector<8x64xf32>
    %c0_24 = arith.constant 0 : index
    %c0_25 = arith.constant 0 : index
    %c0_26 = arith.constant 0 : index
    %202 = vector.load %arg8[%c0_24, %c0_25, %c0_26] : memref<1x8x64xf32, #tpu.memory_space<vmem>>, vector<1x8x64xf32>
    %203 = vector.shape_cast %202 : vector<1x8x64xf32> to vector<8x64xf32>
    %204 = vector.shape_cast %201 : vector<8x64xf32> to vector<1x8x64xf32>
    tpu.vector_store %arg8[%c0_24, %c0_25, %c0_26], %204 {strides = array<i32>} : memref<1x8x64xf32, #tpu.memory_space<vmem>>, vector<1x8x64xf32>,
    return
  }
  func.func @transform_0(%arg0: i32) -> (i32, i32, i32) {
    %c0_i32 = arith.constant 0 : i32
    %c0_i32_0 = arith.constant 0 : i32
    %c0_i32_1 = arith.constant 0 : i32
    return %arg0, %c0_i32, %c0_i32_0 : i32, i32, i32
  }
  func.func @transform_1(%arg0: i32) -> (i32, i32) {
    %c0_i32 = arith.constant 0 : i32
    %c0_i32_0 = arith.constant 0 : i32
    %c0_i32_1 = arith.constant 0 : i32
    return %c0_i32, %c0_i32_0 : i32, i32
  }
  func.func @transform_2(%arg0: i32) -> (i32, i32) {
    %c0_i32 = arith.constant 0 : i32
    %c0_i32_0 = arith.constant 0 : i32
    %c0_i32_1 = arith.constant 0 : i32
    return %c0_i32, %c0_i32_0 : i32, i32
  }
  func.func @transform_3(%arg0: i32) -> (i32, i32) {
    %c0_i32 = arith.constant 0 : i32
    %c0_i32_0 = arith.constant 0 : i32
    %c0_i32_1 = arith.constant 0 : i32
    return %c0_i32, %c0_i32_0 : i32, i32
  }
  func.func @transform_4(%arg0: i32) -> (i32, i32) {
    %c0_i32 = arith.constant 0 : i32
    %c0_i32_0 = arith.constant 0 : i32
    %c0_i32_1 = arith.constant 0 : i32
    return %c0_i32, %c0_i32_0 : i32, i32
  }
  func.func @transform_5(%arg0: i32) -> (i32, i32) {
    %c0_i32 = arith.constant 0 : i32
    %c0_i32_0 = arith.constant 0 : i32
    %c0_i32_1 = arith.constant 0 : i32
    return %c0_i32, %c0_i32_0 : i32, i32
  }
  func.func @transform_6(%arg0: i32) -> i32 {
    %c0_i32 = arith.constant 0 : i32
    %c0_i32_0 = arith.constant 0 : i32
    return %c0_i32 : i32
  }
  func.func @transform_7(%arg0: i32) -> (i32, i32, i32) {
    %c0_i32 = arith.constant 0 : i32
    %c0_i32_0 = arith.constant 0 : i32
    %c0_i32_1 = arith.constant 0 : i32
    return %arg0, %c0_i32, %c0_i32_0 : i32, i32, i32
  }
}

</mosaic_0001>

<llo_original>
// kernel: tpu_custom_call.1
$region0: #{tpu_custom_call.1}
  #allocation0 [shape = 'u32[]', space=smem, size = 0x4, offset = 0x4, fixed_abs, tag = 'smem constant byte address 0x4 - core index']
  #allocation1 [shape = 'u32[144,128]{1,0:T(1,128)}', space=vmem, size = 0x12000, scoped, tag = 'internal scratch']
  #allocation2 [shape = 'f32[1]{0:T(128)S(6)}', space=smem, size = 0x200, scoped, tag = 'scoped memory for tpu_custom_call.1']
  %s0 = inlined_call_operand.vmem [shape: f32[2,4,256], index: 0, kind: input, shape index: {}]
  %s1 = inlined_call_operand.vmem [shape: f32[256,64], index: 1, kind: input, shape index: {}]
  %s2 = inlined_call_operand.vmem [shape: f32[4,9], index: 2, kind: input, shape index: {}]
  %s3 = inlined_call_operand.vmem [shape: f32[8,4], index: 3, kind: input, shape index: {}]
  %s4 = inlined_call_operand.vmem [shape: f32[8,9], index: 4, kind: input, shape index: {}]
  %s5 = inlined_call_operand.vmem [shape: f32[8,12], index: 5, kind: input, shape index: {}]
  %s6 = inlined_call_operand.<no memory space> [shape: f32[1], index: 6, kind: input, shape index: {}]
  %s7 = inlined_call_operand.hbm [shape: f32[2,8,64], index: 7, kind: output, shape index: {}]
  %s8 = sld [smem:[#allocation0]]
  $region61: #{tpu_custom_call.1} parent=0
    _
  %s10 = ssub.s32 1, %s8
  %s11 = scalar_select 0, %s10, %s8
  %12 = sst [smem:[#allocation2]] %s6
  $region1: #{tpu_custom_call.1} parent=0
    #allocation3 [shape = 'u8[8192]{0}', space=vmem, size = 0x2000, scoped, tag = 'output window, operand 0']
    #allocation4 [shape = 's32[2]{0}', space=sflag, size = 0x8, scoped, tag = 'scoped memory for tpu_custom_call.1']
    %13 = vsyncpa [#allocation4], 0
    %s14 = scalar_lea.sflag [#allocation4], 1
    %15 = vsyncpa %s14, 0
    loop: start=0, step=1, limit=4
    $region2: #{tpu_custom_call.1} parent=1 // loop_pre_header
      _
    $region3: #{tpu_custom_call.1} parent=1 // loop_header
      %s17 = sphi 0, %s21
      %p18 = scmp.ge.s32.totalorder %s17, 4
      %s27 = sphi 0, %s29
      %s30 = sphi 0, %s27
      %s31 = sphi 0, %s30
      %s47 = sphi 0, %s31
      %s51 = sphi 0, %s51
      %s53 = sphi 0, %s51
      %s54 = sphi 0, %s53
      %s68 = sphi 0, %s54
      %s72 = sphi 0, %s72
      %s74 = sphi 0, %s72
      %s75 = sphi 0, %s74
      %s89 = sphi 0, %s75
      %s93 = sphi 0, %s93
      %s95 = sphi 0, %s93
      %s96 = sphi 0, %s95
      %s110 = sphi 0, %s96
      %s114 = sphi 0, %s114
      %s116 = sphi 0, %s114
      %s117 = sphi 0, %s116
      %s131 = sphi 0, %s117
      %s135 = sphi 0, %s135
      %s137 = sphi 0, %s135
      %s138 = sphi 0, %s137
      %s152 = sphi 0, %s138
      %s156 = sphi 0, %s156
      %s158 = sphi 0, %s156
      %s159 = sphi 0, %s158
      %s173 = sphi 0, %s159
      %s179 = sphi 0, %s181
      %s182 = sphi 0, %s179
      %s183 = sphi 0, %s182
      %s199 = sphi 0, %s183
    $region4: #{tpu_custom_call.1} parent=1 // loop_header_branch
      %20 = sbr.rel (%p18) target = $region8
    $region5: #{tpu_custom_call.1} parent=1 // loop_body
      %s22 = ssub.s32 %s17, 1
      %s23 = ssub.s32 %s17, 2
      %s24 = sadd.s32 %s17, 1
      %s25 = ssub.s32 %s17, %s24
      %p26 = scmp.eq.s32.totalorder %s25, 0
      %s28 = sadd.s32 %s27, 1
      %s29 = scalar_select %p26, %s27, %s28
      %p32 = pneg %p26
      %p33 = scmp.eq.s32.totalorder %s17, 1
      %p34 = por %p32, %p33
      %p35 = scmp.ne.s32.totalorder %s27, %s30
      %p36 = scmp.eq.s32.totalorder %s17, 0
      %p37 = por %p35, %p36
      %p38 = scmp.ne.s32.totalorder %s27, %s30
      %p39 = scmp.eq.s32.totalorder %s22, 1
      %p40 = por %p38, %p39
      %p41 = scmp.ne.s32.totalorder %s30, %s31
      %p42 = scmp.eq.s32.totalorder %s22, 0
      %p43 = por %p41, %p42
      %p44 = scmp.ne.s32.totalorder %s30, %s31
      %p45 = scmp.eq.s32.totalorder %s23, 1
      %p46 = por %p44, %p45
      %p48 = scmp.ne.s32.totalorder %s31, %s47
      %p49 = scmp.eq.s32.totalorder %s23, 0
      %p50 = por %p48, %p49
      %s52 = sadd.s32 %s51, 1
      %p55 = scmp.eq.s32.totalorder %s17, 1
      %p56 = scmp.ne.s32.totalorder %s51, %s53
      %p57 = scmp.eq.s32.totalorder %s17, 0
      %p58 = por %p56, %p57
      %p59 = scmp.ne.s32.totalorder %s51, %s53
      %p60 = scmp.eq.s32.totalorder %s22, 1
      %p61 = por %p59, %p60
      %p62 = scmp.ne.s32.totalorder %s53, %s54
      %p63 = scmp.eq.s32.totalorder %s22, 0
      %p64 = por %p62, %p63
      %p65 = scmp.ne.s32.totalorder %s53, %s54
      %p66 = scmp.eq.s32.totalorder %s23, 1
      %p67 = por %p65, %p66
      %p69 = scmp.ne.s32.totalorder %s54, %s68
      %p70 = scmp.eq.s32.totalorder %s23, 0
      %p71 = por %p69, %p70
      %s73 = sadd.s32 %s72, 1
      %p76 = scmp.eq.s32.totalorder %s17, 1
      %p77 = scmp.ne.s32.totalorder %s72, %s74
      %p78 = scmp.eq.s32.totalorder %s17, 0
      %p79 = por %p77, %p78
      %p80 = scmp.ne.s32.totalorder %s72, %s74
      %p81 = scmp.eq.s32.totalorder %s22, 1
      %p82 = por %p80, %p81
      %p83 = scmp.ne.s32.totalorder %s74, %s75
      %p84 = scmp.eq.s32.totalorder %s22, 0
      %p85 = por %p83, %p84
      %p86 = scmp.ne.s32.totalorder %s74, %s75
      %p87 = scmp.eq.s32.totalorder %s23, 1
      %p88 = por %p86, %p87
      %p90 = scmp.ne.s32.totalorder %s75, %s89
      %p91 = scmp.eq.s32.totalorder %s23, 0
      %p92 = por %p90, %p91
      %s94 = sadd.s32 %s93, 1
      %p97 = scmp.eq.s32.totalorder %s17, 1
      %p98 = scmp.ne.s32.totalorder %s93, %s95
      %p99 = scmp.eq.s32.totalorder %s17, 0
      %p100 = por %p98, %p99
      %p101 = scmp.ne.s32.totalorder %s93, %s95
      %p102 = scmp.eq.s32.totalorder %s22, 1
      %p103 = por %p101, %p102
      %p104 = scmp.ne.s32.totalorder %s95, %s96
      %p105 = scmp.eq.s32.totalorder %s22, 0
      %p106 = por %p104, %p105
      %p107 = scmp.ne.s32.totalorder %s95, %s96
      %p108 = scmp.eq.s32.totalorder %s23, 1
      %p109 = por %p107, %p108
      %p111 = scmp.ne.s32.totalorder %s96, %s110
      %p112 = scmp.eq.s32.totalorder %s23, 0
      %p113 = por %p111, %p112
      %s115 = sadd.s32 %s114, 1
      %p118 = scmp.eq.s32.totalorder %s17, 1
      %p119 = scmp.ne.s32.totalorder %s114, %s116
      %p120 = scmp.eq.s32.totalorder %s17, 0
      %p121 = por %p119, %p120
      %p122 = scmp.ne.s32.totalorder %s114, %s116
      %p123 = scmp.eq.s32.totalorder %s22, 1
      %p124 = por %p122, %p123
      %p125 = scmp.ne.s32.totalorder %s116, %s117
      %p126 = scmp.eq.s32.totalorder %s22, 0
      %p127 = por %p125, %p126
      %p128 = scmp.ne.s32.totalorder %s116, %s117
      %p129 = scmp.eq.s32.totalorder %s23, 1
      %p130 = por %p128, %p129
      %p132 = scmp.ne.s32.totalorder %s117, %s131
      %p133 = scmp.eq.s32.totalorder %s23, 0
      %p134 = por %p132, %p133
      %s136 = sadd.s32 %s135, 1
      %p139 = scmp.eq.s32.totalorder %s17, 1
      %p140 = scmp.ne.s32.totalorder %s135, %s137
      %p141 = scmp.eq.s32.totalorder %s17, 0
      %p142 = por %p140, %p141
      %p143 = scmp.ne.s32.totalorder %s135, %s137
      %p144 = scmp.eq.s32.totalorder %s22, 1
      %p145 = por %p143, %p144
      %p146 = scmp.ne.s32.totalorder %s137, %s138
      %p147 = scmp.eq.s32.totalorder %s22, 0
      %p148 = por %p146, %p147
      %p149 = scmp.ne.s32.totalorder %s137, %s138
      %p150 = scmp.eq.s32.totalorder %s23, 1
      %p151 = por %p149, %p150
      %p153 = scmp.ne.s32.totalorder %s138, %s152
      %p154 = scmp.eq.s32.totalorder %s23, 0
      %p155 = por %p153, %p154
      %s157 = sadd.s32 %s156, 1
      %p160 = scmp.eq.s32.totalorder %s17, 1
      %p161 = scmp.ne.s32.totalorder %s156, %s158
      %p162 = scmp.eq.s32.totalorder %s17, 0
      %p163 = por %p161, %p162
      %p164 = scmp.ne.s32.totalorder %s156, %s158
      %p165 = scmp.eq.s32.totalorder %s22, 1
      %p166 = por %p164, %p165
      %p167 = scmp.ne.s32.totalorder %s158, %s159
      %p168 = scmp.eq.s32.totalorder %s22, 0
      %p169 = por %p167, %p168
      %p170 = scmp.ne.s32.totalorder %s158, %s159
      %p171 = scmp.eq.s32.totalorder %s23, 1
      %p172 = por %p170, %p171
      %p174 = scmp.ne.s32.totalorder %s159, %s173
      %p175 = scmp.eq.s32.totalorder %s23, 0
      %p176 = por %p174, %p175
      %s177 = ssub.s32 %s17, %s24
      %p178 = scmp.eq.s32.totalorder %s177, 0
      %s180 = sadd.s32 %s179, 1
      %s181 = scalar_select %p178, %s179, %s180
      %p184 = pneg %p178
      %p185 = scmp.eq.s32.totalorder %s17, 1
      %p186 = por %p184, %p185
      %p187 = scmp.ne.s32.totalorder %s179, %s182
      %p188 = scmp.eq.s32.totalorder %s17, 0
      %p189 = por %p187, %p188
      %p190 = scmp.ne.s32.totalorder %s179, %s182
      %p191 = scmp.eq.s32.totalorder %s22, 1
      %p192 = por %p190, %p191
      %p193 = scmp.ne.s32.totalorder %s182, %s183
      %p194 = scmp.eq.s32.totalorder %s22, 0
      %p195 = por %p193, %p194
      %p196 = scmp.ne.s32.totalorder %s182, %s183
      %p197 = scmp.eq.s32.totalorder %s23, 1
      %p198 = por %p196, %p197
      %p200 = scmp.ne.s32.totalorder %s183, %s199
      %p201 = scmp.eq.s32.totalorder %s23, 0
      %p202 = por %p200, %p201
      %p203 = scmp.le.s32.totalorder 1, %s17
      %p204 = scmp.lt.s32.totalorder %s17, 3
      %p205 = pnand %p203, %p204
      %p206 = pneg %p205
      // Predicated region
      $region9: #{tpu_custom_call.1} parent=5 // pred_check
        _
      $region10: #{tpu_custom_call.1} parent=5 // pred_check_branch
        %208 = sbr.rel (%p205) target = $region12
      $region11: #{tpu_custom_call.1} parent=5 // pred_region
        %s209 = ssub.s32 %s17, 1
        // Predicated region
        $region13: #{tpu_custom_call.1} parent=11 // pred_check
          %p210 = pneg %p64
        $region14: #{tpu_custom_call.1} parent=11 // pred_check_branch
          %212 = sbr.rel (%p210) target = $region16
        $region15: #{tpu_custom_call.1} parent=11 // pred_region
          _
        $region16: #{tpu_custom_call.1} parent=11 // pred_fallthru
          _
        // Predicated region
        $region17: #{tpu_custom_call.1} parent=11 // pred_check
          %p213 = pneg %p85
        $region18: #{tpu_custom_call.1} parent=11 // pred_check_branch
          %215 = sbr.rel (%p213) target = $region20
        $region19: #{tpu_custom_call.1} parent=11 // pred_region
          _
        $region20: #{tpu_custom_call.1} parent=11 // pred_fallthru
          _
        // Predicated region
        $region21: #{tpu_custom_call.1} parent=11 // pred_check
          %p216 = pneg %p106
        $region22: #{tpu_custom_call.1} parent=11 // pred_check_branch
          %218 = sbr.rel (%p216) target = $region24
        $region23: #{tpu_custom_call.1} parent=11 // pred_region
          _
        $region24: #{tpu_custom_call.1} parent=11 // pred_fallthru
          _
        // Predicated region
        $region25: #{tpu_custom_call.1} parent=11 // pred_check
          %p219 = pneg %p127
        $region26: #{tpu_custom_call.1} parent=11 // pred_check_branch
          %221 = sbr.rel (%p219) target = $region28
        $region27: #{tpu_custom_call.1} parent=11 // pred_region
          _
        $region28: #{tpu_custom_call.1} parent=11 // pred_fallthru
          _
        // Predicated region
        $region29: #{tpu_custom_call.1} parent=11 // pred_check
          %p222 = pneg %p148
        $region30: #{tpu_custom_call.1} parent=11 // pred_check_branch
          %224 = sbr.rel (%p222) target = $region32
        $region31: #{tpu_custom_call.1} parent=11 // pred_region
          _
        $region32: #{tpu_custom_call.1} parent=11 // pred_fallthru
          _
        // Predicated region
        $region33: #{tpu_custom_call.1} parent=11 // pred_check
          %p225 = pneg %p169
        $region34: #{tpu_custom_call.1} parent=11 // pred_check_branch
          %227 = sbr.rel (%p225) target = $region36
        $region35: #{tpu_custom_call.1} parent=11 // pred_region
          _
        $region36: #{tpu_custom_call.1} parent=11 // pred_fallthru
          _
      $region12: #{tpu_custom_call.1} parent=5 // pred_fallthru
        _
      %p228 = scmp.lt.s32.totalorder %s17, 2
      // Predicated region
      $region37: #{tpu_custom_call.1} parent=5 // pred_check
        %p229 = pneg %p228
      $region38: #{tpu_custom_call.1} parent=5 // pred_check_branch
        %231 = sbr.rel (%p229) target = $region40
      $region39: #{tpu_custom_call.1} parent=5 // pred_region
        // Predicated region
        $region41: #{tpu_custom_call.1} parent=39 // pred_check
          %p232 = pneg %p37
        $region42: #{tpu_custom_call.1} parent=39 // pred_check_branch
          %234 = sbr.rel (%p232) target = $region44
        $region43: #{tpu_custom_call.1} parent=39 // pred_region
          %p235 = scmp.lt.s32.totalorder %s17, 1
          %s236 = scalar_select %p235, %s17, 1
          %s237 = smul.addr %s236, 2
          %s238 = smul.addr %s237, 4
          %s239 = scalar_lea.vmem %s0, %s238
        $region44: #{tpu_custom_call.1} parent=39 // pred_fallthru
          _
      $region40: #{tpu_custom_call.1} parent=5 // pred_fallthru
        _
      %p240 = scmp.le.s32.totalorder 1, %s17
      %p241 = scmp.lt.s32.totalorder %s17, 3
      %p242 = pnand %p240, %p241
      %p243 = pneg %p242
      // Predicated region
      $region45: #{tpu_custom_call.1} parent=5 // pred_check
        _
      $region46: #{tpu_custom_call.1} parent=5 // pred_check_branch
        %245 = sbr.rel (%p242) target = $region48
      $region47: #{tpu_custom_call.1} parent=5 // pred_region
        %s246 = ssub.s32 %s17, 1
        %p247 = scmp.lt.s32.totalorder %s22, 1
        %s248 = scalar_select %p247, %s22, 1
        %s249 = smul.addr %s248, 2
        %s250 = smul.addr %s249, 4
        %s251 = scalar_lea.vmem %s0, %s250
        %p252 = pneg %p43
        %p253 = pneg %p40
        %p254 = pneg %p64
        %p255 = pneg %p61
        %p256 = pneg %p85
        %p257 = pneg %p82
        %p258 = pneg %p106
        %p259 = pneg %p103
        %p260 = pneg %p127
        %p261 = pneg %p124
        %p262 = pneg %p148
        %p263 = pneg %p145
        %p264 = pneg %p169
        %p265 = pneg %p166
        %p266 = pneg %p195
        %p267 = pneg %p192
        %s268 = sand.u32 %s182, 1
        %s269 = scalar_lea.sflag [#allocation4], %s268
        %s270 = sand.u32 %s182, 1
        %s271 = smul.addr %s270, 8
        %s272 = scalar_lea.vmem [#allocation3], %s271
        %p273 = scmp.lt.s32.totalorder %s22, 1
        %s274 = scalar_select %p273, %s22, 1
        %s275 = smul.addr %s274, 2
        %s276 = smul.addr %s275, 4
        %s277 = scalar_lea.vmem %s0, %s276
        %v278 = vld [vmem:[%s277] sm:$0xff]
        %v280 = vcombine.high %v278, %v278
        %281 = vrot.lane.b32.xlu0 %v278, 127
        %v282 = vpop.permute.xlu0 %281
        %283 = vrot.lane.b32.xlu0 %v280, 127
        %v284 = vpop.permute.xlu0 %283
        %vm285 = vcmask 1039360
        %v286 = vsel %vm285, %v282, %v284
        %v289 = vsel %vm285, %v284, %v282
        %v291 = vcombine.low %v286, %v289
        %v293 = vmax.f32 %v278, %v291
        %294 = vrot.lane.b32.xlu0 %v278, 112
        %v295 = vpop.permute.xlu0 %294
        %296 = vrot.lane.b32.xlu0 %v280, 112
        %v297 = vpop.permute.xlu0 %296
        %vm298 = vcmask 916480
        %v299 = vsel %vm298, %v295, %v297
        %v303 = vsel %vm298, %v297, %v295
        %304 = vrot.lane.b32.xlu0 %v278, 111
        %v305 = vpop.permute.xlu0 %304
        %306 = vrot.lane.b32.xlu0 %v280, 111
        %v307 = vpop.permute.xlu0 %306
        %vm308 = vcmask 908288
        %v309 = vsel %vm308, %v305, %v307
        %v313 = vsel %vm308, %v307, %v305
        %v314 = vmax.f32 %v299, %v309
        %v315 = vmax.f32 %v303, %v313
        %v318 = vcombine.low %v314, %v315
        %v320 = vmax.f32 %v293, %v318
        %v321 = vld [vmem:[%s1] sm:$0xff]
        %v322 = vld [vmem:[%s1 + $0x8] sm:$0xff]
        %v323 = vld [vmem:[%s1 + $0x10] sm:$0xff]
        %v324 = vld [vmem:[%s1 + $0x18] sm:$0xff]
        %v325 = vld [vmem:[%s1 + $0x20] sm:$0xff]
        %v326 = vld [vmem:[%s1 + $0x28] sm:$0xff]
        %v327 = vld [vmem:[%s1 + $0x30] sm:$0xff]
        %v328 = vld [vmem:[%s1 + $0x38] sm:$0xff]
        %v329 = vld [vmem:[%s1 + $0x40] sm:$0xff]
        %v330 = vld [vmem:[%s1 + $0x48] sm:$0xff]
        %v331 = vld [vmem:[%s1 + $0x50] sm:$0xff]
        %v332 = vld [vmem:[%s1 + $0x58] sm:$0xff]
        %v333 = vld [vmem:[%s1 + $0x60] sm:$0xff]
        %v334 = vld [vmem:[%s1 + $0x68] sm:$0xff]
        %v335 = vld [vmem:[%s1 + $0x70] sm:$0xff]
        %v336 = vld [vmem:[%s1 + $0x78] sm:$0xff]
        %v337 = vld [vmem:[%s1 + $0x80] sm:$0xff]
        %v338 = vld [vmem:[%s1 + $0x88] sm:$0xff]
        %v339 = vld [vmem:[%s1 + $0x90] sm:$0xff]
        %v340 = vld [vmem:[%s1 + $0x98] sm:$0xff]
        %v341 = vld [vmem:[%s1 + $0xa0] sm:$0xff]
        %v342 = vld [vmem:[%s1 + $0xa8] sm:$0xff]
        %v343 = vld [vmem:[%s1 + $0xb0] sm:$0xff]
        %v344 = vld [vmem:[%s1 + $0xb8] sm:$0xff]
        %v345 = vld [vmem:[%s1 + $0xc0] sm:$0xff]
        %v346 = vld [vmem:[%s1 + $0xc8] sm:$0xff]
        %v347 = vld [vmem:[%s1 + $0xd0] sm:$0xff]
        %v348 = vld [vmem:[%s1 + $0xd8] sm:$0xff]
        %v349 = vld [vmem:[%s1 + $0xe0] sm:$0xff]
        %v350 = vld [vmem:[%s1 + $0xe8] sm:$0xff]
        %v351 = vld [vmem:[%s1 + $0xf0] sm:$0xff]
        %v352 = vld [vmem:[%s1 + $0xf8] sm:$0xff]
        %v354 = vcombine.high %v320, %v320
        %356 = vmatprep.subr.mxu0 0.0
        %357 = vmatpush1.msra.mxu0 %v321
        %358 = vmatprep.subr.mxu0 0.0
        %359 = vmatpush1.msra.mxu0 %v322
        %360 = vmatprep.subr.mxu0 0.0
        %361 = vmatpush1.msra.mxu0 %v323
        %362 = vmatprep.subr.mxu0 0.0
        %363 = vmatpush1.msra.mxu0 %v324
        %364 = vmatprep.subr.mxu0 0.0
        %365 = vmatpush1.msra.mxu0 %v325
        %366 = vmatprep.subr.mxu0 0.0
        %367 = vmatpush1.msra.mxu0 %v326
        %368 = vmatprep.subr.mxu0 0.0
        %369 = vmatpush1.msra.mxu0 %v327
        %370 = vmatprep.subr.mxu0 0.0
        %371 = vmatpush1.msra.mxu0 %v328
        %372 = vmatprep.subr.mxu0 0.0
        %373 = vmatpush1.msra.mxu0 %v329
        %374 = vmatprep.subr.mxu0 0.0
        %375 = vmatpush1.msra.mxu0 %v330
        %376 = vmatprep.subr.mxu0 0.0
        %377 = vmatpush1.msra.mxu0 %v331
        %378 = vmatprep.subr.mxu0 0.0
        %379 = vmatpush1.msra.mxu0 %v332
        %380 = vmatprep.subr.mxu0 0.0
        %381 = vmatpush1.msra.mxu0 %v333
        %382 = vmatprep.subr.mxu0 0.0
        %383 = vmatpush1.msra.mxu0 %v334
        %384 = vmatprep.subr.mxu0 0.0
        %385 = vmatpush1.msra.mxu0 %v335
        %386 = vmatprep.subr.mxu0 0.0
        %387 = vmatpush1.msra.mxu0 %v336
        %388 = vmatprep.subr.mxu0 0.0
        %389 = vmatpush1.msra.mxu0 %v337
        %390 = vmatprep.subr.mxu0 0.0
        %391 = vmatpush1.msra.mxu0 %v338
        %392 = vmatprep.subr.mxu0 0.0
        %393 = vmatpush1.msra.mxu0 %v339
        %394 = vmatprep.subr.mxu0 0.0
        %395 = vmatpush1.msra.mxu0 %v340
        %396 = vmatprep.subr.mxu0 0.0
        %397 = vmatpush1.msra.mxu0 %v341
        %398 = vmatprep.subr.mxu0 0.0
        %399 = vmatpush1.msra.mxu0 %v342
        %400 = vmatprep.subr.mxu0 0.0
        %401 = vmatpush1.msra.mxu0 %v343
        %402 = vmatprep.subr.mxu0 0.0
        %403 = vmatpush1.msra.mxu0 %v344
        %404 = vmatprep.subr.mxu0 0.0
        %405 = vmatpush1.msra.mxu0 %v345
        %406 = vmatprep.subr.mxu0 0.0
        %407 = vmatpush1.msra.mxu0 %v346
        %408 = vmatprep.subr.mxu0 0.0
        %409 = vmatpush1.msra.mxu0 %v347
        %410 = vmatprep.subr.mxu0 0.0
        %411 = vmatpush1.msra.mxu0 %v348
        %412 = vmatprep.subr.mxu0 0.0
        %413 = vmatpush1.msra.mxu0 %v349
        %414 = vmatprep.subr.mxu0 0.0
        %415 = vmatpush1.msra.mxu0 %v350
        %416 = vmatprep.subr.mxu0 0.0
        %417 = vmatpush1.msra.mxu0 %v351
        %418 = vmatprep.subr.mxu0 0.0
        %419 = vmatpush1.msra.mxu0 %v352
        %420 = vmatprep.mubr.f32.mxu0 %v354
        %421 = vmatmul.mubr.f32.gmra.mrb[0].mxu0 %v320
        %v422 = vpop.f32.mrb[0].mxu0
        %v423 = vadd.f32 0.0, %v422
        %v424 = vpop.f32.mrb[0].mxu0
        %425 = vdwg.mxu0
        %v426 = vlaneseq
        %v427 = vand.u32 %v426, 127
        %vm428 = vcmp.lt.s32.totalorder %v427, 0
        %v429 = vsub.s32 0, %v427
        %v430 = vsel %vm428, %v429, %v427
        %v431 = vshrl.u32 %v430, 3
        %v432 = vand.u32 %v430, 7
        %v433 = vsub.s32 0, %v432
        %v434 = vsel %vm428, %v433, %v432
        %vm435 = vcmp.ne.s32.totalorder %v434, 0
        %vm436 = vcmp.lt.s32.totalorder %v434, 0
        %vm437 = vmand %vm436, %vm435
        %v438 = vadd.s32 %v434, 8
        %v439 = vsel %vm437, %v438, %v434
        %s440 = sld [smem:[#allocation2]]
        %v441 = vld [vmem:[%s2] sm:$0xf]
        %vm442 = vcmp.eq.s32.totalorder %v439, 0
        %444 = vrot.lane.b32.xlu0 %v423, 121
        %v445 = vpop.permute.xlu0 %444
        %447 = vrot.lane.b32.xlu0 %v423, 57
        %v448 = vpop.permute.xlu0 %447
        %vm450 = vcmask 465920
        %v451 = vsel %vm450, %v445, %v448
        %452 = vrot.lane.b32.xlu0 %v423, 65
        %v453 = vpop.permute.xlu0 %452
        %455 = vrot.lane.b32.xlu0 %v423, 1
        %v456 = vpop.permute.xlu0 %455
        %vm458 = vcmask 7168
        %v459 = vsel %vm458, %v453, %v456
        %v460 = vsel %vm442, 1, 0
        %vm461 = vcmp.eq.s32.totalorder %v460, 1
        %v462 = vsel %vm461, %v451, %v459
        %464 = vrot.lane.b32.xlu0 %v462, 72
        %v465 = vpop.permute.xlu0 %464
        %467 = vrot.lane.b32.xlu0 %v462, 8
        %v468 = vpop.permute.xlu0 %467
        %vm470 = vcmask 64512
        %v471 = vsel %vm470, %v465, %v468
        %473 = vset.pattern.permute.xlu0 0
        %474 = vperm.xlu0 %473, %v441
        %v475 = vpop.permute.xlu0 %474
        %v477 = vmul.f32 %v471, %v475
        %v478 = vadd.f32 %v477, 0.0
        %479 = vset.pattern.permute.xlu0 3
        %480 = vperm.xlu0 %479, %v441
        %v481 = vpop.permute.xlu0 %480
        %v483 = vmul.f32 %v462, %v481
        %v484 = vadd.f32 %v478, %v483
        %485 = vrot.lane.b32.xlu0 %v462, 120
        %v486 = vpop.permute.xlu0 %485
        %488 = vrot.lane.b32.xlu0 %v462, 56
        %v489 = vpop.permute.xlu0 %488
        %vm491 = vcmask 457728
        %v492 = vsel %vm491, %v486, %v489
        %493 = vset.pattern.permute.xlu0 6
        %494 = vperm.xlu0 %493, %v441
        %v495 = vpop.permute.xlu0 %494
        %v497 = vmul.f32 %v492, %v495
        %v498 = vadd.f32 %v484, %v497
        %499 = vrot.lane.b32.xlu0 %v423, 72
        %v500 = vpop.permute.xlu0 %499
        %502 = vrot.lane.b32.xlu0 %v423, 8
        %v503 = vpop.permute.xlu0 %502
        %v505 = vsel %vm470, %v500, %v503
        %506 = vset.pattern.permute.xlu0 1
        %507 = vperm.xlu0 %506, %v441
        %v508 = vpop.permute.xlu0 %507
        %v510 = vmul.f32 %v505, %v508
        %v511 = vadd.f32 %v498, %v510
        %512 = vset.pattern.permute.xlu0 4
        %513 = vperm.xlu0 %512, %v441
        %v514 = vpop.permute.xlu0 %513
        %v516 = vmul.f32 %v423, %v514
        %v517 = vadd.f32 %v511, %v516
        %518 = vrot.lane.b32.xlu0 %v423, 120
        %v519 = vpop.permute.xlu0 %518
        %521 = vrot.lane.b32.xlu0 %v423, 56
        %v522 = vpop.permute.xlu0 %521
        %v524 = vsel %vm491, %v519, %v522
        %525 = vset.pattern.permute.xlu0 7
        %526 = vperm.xlu0 %525, %v441
        %v527 = vpop.permute.xlu0 %526
        %v529 = vmul.f32 %v524, %v527
        %v530 = vadd.f32 %v517, %v529
        %vm531 = vcmp.eq.s32.totalorder %v439, 7
        %532 = vrot.lane.b32.xlu0 %v423, 71
        %v533 = vpop.permute.xlu0 %532
        %535 = vrot.lane.b32.xlu0 %v423, 7
        %v536 = vpop.permute.xlu0 %535
        %vm538 = vcmask 56320
        %v539 = vsel %vm538, %v533, %v536
        %540 = vrot.lane.b32.xlu0 %v423, 127
        %v541 = vpop.permute.xlu0 %540
        %543 = vrot.lane.b32.xlu0 %v423, 63
        %v544 = vpop.permute.xlu0 %543
        %vm546 = vcmask 515072
        %v547 = vsel %vm546, %v541, %v544
        %v548 = vsel %vm531, 1, 0
        %vm549 = vcmp.eq.s32.totalorder %v548, 1
        %v550 = vsel %vm549, %v539, %v547
        %552 = vrot.lane.b32.xlu0 %v550, 72
        %v553 = vpop.permute.xlu0 %552
        %555 = vrot.lane.b32.xlu0 %v550, 8
        %v556 = vpop.permute.xlu0 %555
        %v558 = vsel %vm470, %v553, %v556
        %559 = vset.pattern.permute.xlu0 2
        %560 = vperm.xlu0 %559, %v441
        %v561 = vpop.permute.xlu0 %560
        %v563 = vmul.f32 %v558, %v561
        %v564 = vadd.f32 %v530, %v563
        %565 = vset.pattern.permute.xlu0 5
        %566 = vperm.xlu0 %565, %v441
        %v567 = vpop.permute.xlu0 %566
        %v569 = vmul.f32 %v550, %v567
        %v570 = vadd.f32 %v564, %v569
        %571 = vrot.lane.b32.xlu0 %v550, 120
        %v572 = vpop.permute.xlu0 %571
        %574 = vrot.lane.b32.xlu0 %v550, 56
        %v575 = vpop.permute.xlu0 %574
        %v577 = vsel %vm491, %v572, %v575
        %578 = vset.pattern.permute.xlu0 8
        %579 = vperm.xlu0 %578, %v441
        %v580 = vpop.permute.xlu0 %579
        %v582 = vmul.f32 %v577, %v580
        %v583 = vadd.f32 %v570, %v582
        %v584 = vadd.f32 %v583, %v423
        %v585 = vld [vmem:[%s3] sm:$0xff]
        %vm586 = vcmask 31744
        %v588 = vsel %vm586, %v585, 0
        %vm590 = vcmask 1043456
        %v592 = vsel %vm590, %v584, 0
        %594 = vmatprep.subr.mxu0 0.0
        %595 = vmatpush1.msra.mxu0 %v592
        %596 = vmatprep.subr.mxu0 0.0
        %597 = vmatpush1.msra.mxu0 0.0
        %598 = vmatprep.subr.mxu0 0.0
        %599 = vmatpush1.msra.mxu0 0.0
        %600 = vmatprep.subr.mxu0 0.0
        %601 = vmatpush1.msra.mxu0 0.0
        %602 = vmatprep.subr.mxu0 0.0
        %603 = vmatpush1.msra.mxu0 0.0
        %604 = vmatprep.subr.mxu0 0.0
        %605 = vmatpush1.msra.mxu0 0.0
        %606 = vmatprep.subr.mxu0 0.0
        %607 = vmatpush1.msra.mxu0 0.0
        %608 = vmatprep.subr.mxu0 0.0
        %609 = vmatpush1.msra.mxu0 0.0
        %610 = vmatprep.subr.mxu0 0.0
        %611 = vmatpush1.msra.mxu0 0.0
        %612 = vmatprep.subr.mxu0 0.0
        %613 = vmatpush1.msra.mxu0 0.0
        %614 = vmatprep.subr.mxu0 0.0
        %615 = vmatpush1.msra.mxu0 0.0
        %616 = vmatprep.subr.mxu0 0.0
        %617 = vmatpush1.msra.mxu0 0.0
        %618 = vmatprep.subr.mxu0 0.0
        %619 = vmatpush1.msra.mxu0 0.0
        %620 = vmatprep.subr.mxu0 0.0
        %621 = vmatpush1.msra.mxu0 0.0
        %622 = vmatprep.subr.mxu0 0.0
        %623 = vmatpush1.msra.mxu0 0.0
        %624 = vmatprep.subr.mxu0 0.0
        %625 = vmatpush1.msra.mxu0 0.0
        %626 = vmatprep.subr.mxu0 0.0
        %627 = vmatpush1.msra.mxu0 0.0
        %628 = vmatprep.subr.mxu0 0.0
        %629 = vmatpush1.msra.mxu0 0.0
        %630 = vmatprep.subr.mxu0 0.0
        %631 = vmatpush1.msra.mxu0 0.0
        %632 = vmatprep.subr.mxu0 0.0
        %633 = vmatpush1.msra.mxu0 0.0
        %634 = vmatprep.subr.mxu0 0.0
        %635 = vmatpush1.msra.mxu0 0.0
        %636 = vmatprep.subr.mxu0 0.0
        %637 = vmatpush1.msra.mxu0 0.0
        %638 = vmatprep.subr.mxu0 0.0
        %639 = vmatpush1.msra.mxu0 0.0
        %640 = vmatprep.subr.mxu0 0.0
        %641 = vmatpush1.msra.mxu0 0.0
        %642 = vmatprep.subr.mxu0 0.0
        %643 = vmatpush1.msra.mxu0 0.0
        %644 = vmatprep.subr.mxu0 0.0
        %645 = vmatpush1.msra.mxu0 0.0
        %646 = vmatprep.subr.mxu0 0.0
        %647 = vmatpush1.msra.mxu0 0.0
        %648 = vmatprep.subr.mxu0 0.0
        %649 = vmatpush1.msra.mxu0 0.0
        %650 = vmatprep.subr.mxu0 0.0
        %651 = vmatpush1.msra.mxu0 0.0
        %652 = vmatprep.subr.mxu0 0.0
        %653 = vmatpush1.msra.mxu0 0.0
        %654 = vmatprep.subr.mxu0 0.0
        %655 = vmatpush1.msra.mxu0 0.0
        %656 = vmatprep.subr.mxu0 0.0
        %657 = vmatpush1.msra.mxu0 0.0
        %658 = vmatprep.mubr.f32.mxu0 0.0
        %659 = vmatmul.mubr.f32.gmra.mrb[0].mxu0 %v588
        %v660 = vpop.f32.mrb[0].mxu0
        %v661 = vadd.f32 0.0, %v660
        %v662 = vpop.f32.mrb[0].mxu0
        %663 = vdwg.mxu0
        %vm664 = vcmp.ge.f32.partialorder %v661, 0.0
        %v665 = vstv %s440
        %v666 = vmul.f32 %v665, %v661
        %v667 = vsel %vm664, %v661, %v666
        %v668 = vld [vmem:[%s4] sm:$0xff]
        %670 = vrot.lane.b32.xlu0 %v667, 121
        %v671 = vpop.permute.xlu0 %670
        %673 = vrot.lane.b32.xlu0 %v667, 57
        %v674 = vpop.permute.xlu0 %673
        %v676 = vsel %vm450, %v671, %v674
        %677 = vrot.lane.b32.xlu0 %v667, 65
        %v678 = vpop.permute.xlu0 %677
        %680 = vrot.lane.b32.xlu0 %v667, 1
        %v681 = vpop.permute.xlu0 %680
        %v683 = vsel %vm458, %v678, %v681
        %v684 = vsel %vm461, %v676, %v683
        %686 = vrot.lane.b32.xlu0 %v684, 72
        %v687 = vpop.permute.xlu0 %686
        %689 = vrot.lane.b32.xlu0 %v684, 8
        %v690 = vpop.permute.xlu0 %689
        %v692 = vsel %vm470, %v687, %v690
        %694 = vset.pattern.permute.xlu0 0
        %695 = vperm.xlu0 %694, %v668
        %v696 = vpop.permute.xlu0 %695
        %v698 = vmul.f32 %v692, %v696
        %v699 = vadd.f32 %v698, 0.0
        %700 = vset.pattern.permute.xlu0 3
        %701 = vperm.xlu0 %700, %v668
        %v702 = vpop.permute.xlu0 %701
        %v704 = vmul.f32 %v684, %v702
        %v705 = vadd.f32 %v699, %v704
        %706 = vrot.lane.b32.xlu0 %v684, 120
        %v707 = vpop.permute.xlu0 %706
        %709 = vrot.lane.b32.xlu0 %v684, 56
        %v710 = vpop.permute.xlu0 %709
        %v712 = vsel %vm491, %v707, %v710
        %713 = vset.pattern.permute.xlu0 6
        %714 = vperm.xlu0 %713, %v668
        %v715 = vpop.permute.xlu0 %714
        %v717 = vmul.f32 %v712, %v715
        %v718 = vadd.f32 %v705, %v717
        %719 = vrot.lane.b32.xlu0 %v667, 72
        %v720 = vpop.permute.xlu0 %719
        %722 = vrot.lane.b32.xlu0 %v667, 8
        %v723 = vpop.permute.xlu0 %722
        %v725 = vsel %vm470, %v720, %v723
        %726 = vset.pattern.permute.xlu0 1
        %727 = vperm.xlu0 %726, %v668
        %v728 = vpop.permute.xlu0 %727
        %v730 = vmul.f32 %v725, %v728
        %v731 = vadd.f32 %v718, %v730
        %732 = vset.pattern.permute.xlu0 4
        %733 = vperm.xlu0 %732, %v668
        %v734 = vpop.permute.xlu0 %733
        %v736 = vmul.f32 %v667, %v734
        %v737 = vadd.f32 %v731, %v736
        %738 = vrot.lane.b32.xlu0 %v667, 120
        %v739 = vpop.permute.xlu0 %738
        %741 = vrot.lane.b32.xlu0 %v667, 56
        %v742 = vpop.permute.xlu0 %741
        %v744 = vsel %vm491, %v739, %v742
        %745 = vset.pattern.permute.xlu0 7
        %746 = vperm.xlu0 %745, %v668
        %v747 = vpop.permute.xlu0 %746
        %v749 = vmul.f32 %v744, %v747
        %v750 = vadd.f32 %v737, %v749
        %751 = vrot.lane.b32.xlu0 %v667, 71
        %v752 = vpop.permute.xlu0 %751
        %754 = vrot.lane.b32.xlu0 %v667, 7
        %v755 = vpop.permute.xlu0 %754
        %v757 = vsel %vm538, %v752, %v755
        %758 = vrot.lane.b32.xlu0 %v667, 127
        %v759 = vpop.permute.xlu0 %758
        %761 = vrot.lane.b32.xlu0 %v667, 63
        %v762 = vpop.permute.xlu0 %761
        %v764 = vsel %vm546, %v759, %v762
        %v765 = vsel %vm549, %v757, %v764
        %767 = vrot.lane.b32.xlu0 %v765, 72
        %v768 = vpop.permute.xlu0 %767
        %770 = vrot.lane.b32.xlu0 %v765, 8
        %v771 = vpop.permute.xlu0 %770
        %v773 = vsel %vm470, %v768, %v771
        %774 = vset.pattern.permute.xlu0 2
        %775 = vperm.xlu0 %774, %v668
        %v776 = vpop.permute.xlu0 %775
        %v778 = vmul.f32 %v773, %v776
        %v779 = vadd.f32 %v750, %v778
        %780 = vset.pattern.permute.xlu0 5
        %781 = vperm.xlu0 %780, %v668
        %v782 = vpop.permute.xlu0 %781
        %v784 = vmul.f32 %v765, %v782
        %v785 = vadd.f32 %v779, %v784
        %786 = vrot.lane.b32.xlu0 %v765, 120
        %v787 = vpop.permute.xlu0 %786
        %789 = vrot.lane.b32.xlu0 %v765, 56
        %v790 = vpop.permute.xlu0 %789
        %v792 = vsel %vm491, %v787, %v790
        %793 = vset.pattern.permute.xlu0 8
        %794 = vperm.xlu0 %793, %v668
        %v795 = vpop.permute.xlu0 %794
        %v797 = vmul.f32 %v792, %v795
        %v798 = vadd.f32 %v785, %v797
        %v799 = vadd.f32 %v798, %v667
        %v800 = vld [vmem:[%s5] sm:$0xff]
        %vm801 = vcmask 97280
        %v803 = vsel %vm801, %v800, 0
        %v805 = vsel %vm590, %v423, 0
        %807 = vmatprep.subr.mxu0 0.0
        %808 = vmatpush1.msra.mxu0 %v799
        %809 = vmatprep.subr.mxu0 0.0
        %810 = vmatpush1.msra.mxu0 %v805
        %811 = vmatprep.subr.mxu0 0.0
        %812 = vmatpush1.msra.mxu0 0.0
        %813 = vmatprep.subr.mxu0 0.0
        %814 = vmatpush1.msra.mxu0 0.0
        %815 = vmatprep.subr.mxu0 0.0
        %816 = vmatpush1.msra.mxu0 0.0
        %817 = vmatprep.subr.mxu0 0.0
        %818 = vmatpush1.msra.mxu0 0.0
        %819 = vmatprep.subr.mxu0 0.0
        %820 = vmatpush1.msra.mxu0 0.0
        %821 = vmatprep.subr.mxu0 0.0
        %822 = vmatpush1.msra.mxu0 0.0
        %823 = vmatprep.subr.mxu0 0.0
        %824 = vmatpush1.msra.mxu0 0.0
        %825 = vmatprep.subr.mxu0 0.0
        %826 = vmatpush1.msra.mxu0 0.0
        %827 = vmatprep.subr.mxu0 0.0
        %828 = vmatpush1.msra.mxu0 0.0
        %829 = vmatprep.subr.mxu0 0.0
        %830 = vmatpush1.msra.mxu0 0.0
        %831 = vmatprep.subr.mxu0 0.0
        %832 = vmatpush1.msra.mxu0 0.0
        %833 = vmatprep.subr.mxu0 0.0
        %834 = vmatpush1.msra.mxu0 0.0
        %835 = vmatprep.subr.mxu0 0.0
        %836 = vmatpush1.msra.mxu0 0.0
        %837 = vmatprep.subr.mxu0 0.0
        %838 = vmatpush1.msra.mxu0 0.0
        %839 = vmatprep.subr.mxu0 0.0
        %840 = vmatpush1.msra.mxu0 0.0
        %841 = vmatprep.subr.mxu0 0.0
        %842 = vmatpush1.msra.mxu0 0.0
        %843 = vmatprep.subr.mxu0 0.0
        %844 = vmatpush1.msra.mxu0 0.0
        %845 = vmatprep.subr.mxu0 0.0
        %846 = vmatpush1.msra.mxu0 0.0
        %847 = vmatprep.subr.mxu0 0.0
        %848 = vmatpush1.msra.mxu0 0.0
        %849 = vmatprep.subr.mxu0 0.0
        %850 = vmatpush1.msra.mxu0 0.0
        %851 = vmatprep.subr.mxu0 0.0
        %852 = vmatpush1.msra.mxu0 0.0
        %853 = vmatprep.subr.mxu0 0.0
        %854 = vmatpush1.msra.mxu0 0.0
        %855 = vmatprep.subr.mxu0 0.0
        %856 = vmatpush1.msra.mxu0 0.0
        %857 = vmatprep.subr.mxu0 0.0
        %858 = vmatpush1.msra.mxu0 0.0
        %859 = vmatprep.subr.mxu0 0.0
        %860 = vmatpush1.msra.mxu0 0.0
        %861 = vmatprep.subr.mxu0 0.0
        %862 = vmatpush1.msra.mxu0 0.0
        %863 = vmatprep.subr.mxu0 0.0
        %864 = vmatpush1.msra.mxu0 0.0
        %865 = vmatprep.subr.mxu0 0.0
        %866 = vmatpush1.msra.mxu0 0.0
        %867 = vmatprep.subr.mxu0 0.0
        %868 = vmatpush1.msra.mxu0 0.0
        %869 = vmatprep.subr.mxu0 0.0
        %870 = vmatpush1.msra.mxu0 0.0
        %871 = vmatprep.mubr.f32.mxu0 0.0
        %872 = vmatmul.mubr.f32.gmra.mrb[0].mxu0 %v803
        %v873 = vpop.f32.mrb[0].mxu0
        %v874 = vadd.f32 0.0, %v873
        %v875 = vpop.f32.mrb[0].mxu0
        %876 = vdwg.mxu0
        %vm877 = vcmask 523264
        %878 = vst.msk [vmem:[%s272] sm:$0xff] %vm877, %v874
        %s879 = sand.u32 %s182, 1
        %s880 = scalar_lea.sflag [#allocation4], %s879
        %s881 = sand.u32 %s182, 1
        %s882 = smul.addr %s881, 8
        %s883 = scalar_lea.vmem [#allocation3], %s882
        // Predicated region
        $region49: #{tpu_custom_call.1} parent=47 // pred_check
          %p884 = pneg %p192
        $region50: #{tpu_custom_call.1} parent=47 // pred_check_branch
          %886 = sbr.rel (%p884) target = $region52
        $region51: #{tpu_custom_call.1} parent=47 // pred_region
          %s888 = ssub.s32 128, 128
          %889 = vsyncadd %s880, %s888
          %s890 = smul.addr %s22, 128
          %s891 = scalar_lea.hbm %s7, %s890
          %s893 = sshll.u32 %s883, 4
          %s894 = int_to_ptr.vmem [resolvable:$true] %s893
          %896 = dma.vmem_to_hbm [thread:$0]  %s894, 128, %s891, %s880
        $region52: #{tpu_custom_call.1} parent=47 // pred_fallthru
          _
      $region48: #{tpu_custom_call.1} parent=5 // pred_fallthru
        _
      %p897 = scmp.le.s32.totalorder 2, %s17
      // Predicated region
      $region53: #{tpu_custom_call.1} parent=5 // pred_check
        %p898 = pneg %p897
      $region54: #{tpu_custom_call.1} parent=5 // pred_check_branch
        %900 = sbr.rel (%p898) target = $region56
      $region55: #{tpu_custom_call.1} parent=5 // pred_region
        %s901 = ssub.s32 %s17, 2
        // Predicated region
        $region57: #{tpu_custom_call.1} parent=55 // pred_check
          %p902 = pneg %p198
        $region58: #{tpu_custom_call.1} parent=55 // pred_check_branch
          %904 = sbr.rel (%p902) target = $region60
        $region59: #{tpu_custom_call.1} parent=55 // pred_region
          %s905 = sand.u32 %s183, 1
          %s906 = scalar_lea.sflag [#allocation4], %s905
          %s907 = sand.u32 %s183, 1
          %s908 = smul.addr %s907, 8
          %s909 = scalar_lea.vmem [#allocation3], %s908
          %910 = dma.done %s906, 128
        $region60: #{tpu_custom_call.1} parent=55 // pred_fallthru
          _
      $region56: #{tpu_custom_call.1} parent=5 // pred_fallthru
        _
    $region6: #{tpu_custom_call.1} parent=1 // loop_footer
      %s21 = sadd.s32 1, %s17
    $region7: #{tpu_custom_call.1} parent=1 // loop_footer_branch
      %16 = sbr.rel target = $region3
    $region8: #{tpu_custom_call.1} parent=1 // loop_exit
      _
    %911 = vsyncpa [#allocation4], 1
    %s912 = scalar_lea.sflag [#allocation4], 1
    %913 = vsyncpa %s912, 1

</llo_original>
